<compile_context>
chip_gen: v5e
topology: v5e:2x2
jax: 0.10.0
libtpu: 0.0.40
codegen_flags: <defaults>
</compile_context>

<pallas_src>
import functools

import jax
import jax.numpy as jnp
from jax import lax
from jax.experimental import pallas as pl
from jax.experimental.pallas import tpu as pltpu

EPS = 1e-5


# ---------------------------------------------------------------------------
# Kernels
# ---------------------------------------------------------------------------

def _row_instance_norm_kernel(x_ref, gb_ref, o_ref):
    """Full-row path: x_ref/o_ref (TR, HW), gb_ref (TR, 2) = [gamma, beta] per row."""
    xf = x_ref[...].astype(jnp.float32)
    gb = gb_ref[...]
    g = gb[:, 0:1]
    b = gb[:, 1:2]

    mean = jnp.mean(xf, axis=-1, keepdims=True)
    centered = xf - mean
    var = jnp.mean(centered * centered, axis=-1, keepdims=True)  # biased (InstanceNorm2d)
    y = centered * (lax.rsqrt(var + EPS) * g) + b

    o_ref[...] = y.astype(o_ref.dtype)


def _stats_kernel(x_ref, s_ref, *, hw, thw):
    """Large-HW path, pass 1: accumulate per-row [sum, sum of squares] over HW tiles."""
    j = pl.program_id(1)

    @pl.when(j == 0)
    def _():
        s_ref[...] = jnp.zeros_like(s_ref)

    xf = x_ref[...].astype(jnp.float32)
    # Mask lanes past the true HW extent in the ragged last HW block.
    col = j * thw + lax.broadcasted_iota(jnp.int32, xf.shape, 1)
    xf = jnp.where(col < hw, xf, 0.0)

    s_ref[...] += jnp.concatenate(
        [jnp.sum(xf, axis=-1, keepdims=True),
         jnp.sum(xf * xf, axis=-1, keepdims=True)],
        axis=-1,
    )


def _apply_kernel(x_ref, ss_ref, o_ref):
    """Large-HW path, pass 2: y = x * scale + shift (scale/shift folded per row)."""
    xf = x_ref[...].astype(jnp.float32)
    ss = ss_ref[...]
    scale = ss[:, 0:1]
    shift = ss[:, 1:2]
    o_ref[...] = (xf * scale + shift).astype(o_ref.dtype)


# ---------------------------------------------------------------------------
# Wrapper / tiling logic
# ---------------------------------------------------------------------------

def _chip_budgets():
    """(target input-block bytes, vmem_limit_bytes or None) per TPU generation."""
    kind = ""
    try:
        kind = jax.devices()[0].device_kind.lower()
    except Exception:
        pass
    if "v5 lite" in kind or "v5e" in kind or "v5lite" in kind:
        # 16 MiB default scoped VMEM: 2 MiB blocks (x2 dbl-buffer in+out = 8 MiB) fit.
        return 2 * 1024 * 1024, None
    if "v6" in kind:
        # 128 MiB physical; bigger blocks are a small free win.
        return 4 * 1024 * 1024, 64 * 1024 * 1024
    if "v7" in kind:
        # 64 MiB physical VMEM: 6 MiB blocks, limit well under physical.
        return 6 * 1024 * 1024, 48 * 1024 * 1024
    return 2 * 1024 * 1024, None  # conservative default for unknown chips


def _pick_row_tile(rows, hw, itemsize, block_budget):
    """Rows per grid step: dtype-aware sublane multiple, sized to the block budget."""
    packing = max(1, 4 // max(itemsize, 1))
    sub = 8 * packing                     # 8 f32 / 16 bf16 / 32 int8-fp8
    row_bytes = hw * 4                    # kernel works in f32
    tr = max(block_budget // max(row_bytes, 1), sub)
    tr = (tr // sub) * sub
    rows_cover = pl.cdiv(rows, sub) * sub
    tr = max(min(tr, rows_cover), sub)
    # Keep the grid >= 2 steps when possible so v7x's two TensorCores both work.
    if rows > sub and pl.cdiv(rows, tr) < 2:
        tr = max(sub, pl.cdiv(pl.cdiv(rows, 2), sub) * sub)
    return tr, sub


def instance_norm_2d(x, gamma, beta):
    """x: (N, C, H, W); gamma, beta: (C,) float32. Affine InstanceNorm2d, eps=1e-5."""
    N, C, H, W = x.shape
    rows, hw = N * C, H * W
    itemsize = x.dtype.itemsize

    block_budget, vmem_limit = _chip_budgets()
    vmem_kw = {} if vmem_limit is None else {"vmem_limit_bytes": vmem_limit}

    # Lane-dense view: one (n, c) instance per row, full spatial extent on lanes.
    x2 = x.reshape(rows, hw)
    g_rows = jnp.tile(gamma.astype(jnp.float32), N)   # (rows,)
    b_rows = jnp.tile(beta.astype(jnp.float32), N)    # (rows,)

    tr, sub = _pick_row_tile(rows, hw, itemsize, block_budget)

    # ---- Fallback for very large spatial extents: tile the HW axis. -------------
    if sub * hw * 4 > block_budget:
        thw = max(128, (block_budget // (sub * 4) // 128) * 128)
        grid = (pl.cdiv(rows, sub), pl.cdiv(hw, thw))

        stats = pl.pallas_call(
            functools.partial(_stats_kernel, hw=hw, thw=thw),
            out_shape=jax.ShapeDtypeStruct((rows, 2), jnp.float32),
            grid_spec=pl.GridSpec(
                grid=grid,
                in_specs=[pl.BlockSpec((sub, thw), lambda i, j: (i, j))],
                out_specs=pl.BlockSpec((sub, 2), lambda i, j: (i, 0)),
            ),
            compiler_params=pltpu.CompilerParams(
                dimension_semantics=("parallel", "arbitrary"), **vmem_kw),
        )(x2)

        mean = stats[:, 0] / hw
        var = jnp.maximum(stats[:, 1] / hw - mean * mean, 0.0)   # biased variance
        rstd = lax.rsqrt(var + EPS)
        scale = rstd * g_rows
        shift = b_rows - mean * scale
        ssarr = jnp.stack([scale, shift], axis=-1)                # (rows, 2) f32

        out2 = pl.pallas_call(
            _apply_kernel,
            out_shape=jax.ShapeDtypeStruct((rows, hw), x.dtype),
            grid_spec=pl.GridSpec(
                grid=grid,
                in_specs=[
                    pl.BlockSpec((sub, thw), lambda i, j: (i, j)),
                    pl.BlockSpec((sub, 2), lambda i, j: (i, 0)),
                ],
                out_specs=pl.BlockSpec((sub, thw), lambda i, j: (i, j)),
            ),
            compiler_params=pltpu.CompilerParams(
                dimension_semantics=("parallel", "parallel"), **vmem_kw),
        )(x2, ssarr)
        return out2.reshape(N, C, H, W)

    # ---- Main path: whole rows per grid step, no input padding. -----------------
    gb = jnp.stack([g_rows, b_rows], axis=-1)          # (rows, 2) f32

    cost = pl.CostEstimate(
        flops=5 * rows * hw,
        transcendentals=rows,
        bytes_accessed=2 * rows * hw * itemsize + rows * 8,
    )

    out2 = pl.pallas_call(
        _row_instance_norm_kernel,
        out_shape=jax.ShapeDtypeStruct((rows, hw), x.dtype),
        grid_spec=pl.GridSpec(
            grid=(pl.cdiv(rows, tr),),                 # ragged last block handled by Pallas
            in_specs=[
                pl.BlockSpec((tr, hw), lambda i: (i, 0)),   # x rows (lane-dense)
                pl.BlockSpec((tr, 2), lambda i: (i, 0)),    # fused [gamma, beta] per row
            ],
            out_specs=pl.BlockSpec((tr, hw), lambda i: (i, 0)),
        ),
        compiler_params=pltpu.CompilerParams(
            dimension_semantics=("parallel",), **vmem_kw),
        cost_estimate=cost,
    )(x2, gb)

    return out2.reshape(N, C, H, W)

    # TODO(synk): for small non-128-multiple spatial sizes (7x7, 14x14) a channels-on-lanes
    # layout would avoid masked partial stores; not needed for the shapes exercised here.


class SwitchingNormalization:
    """JAX mirror of the PyTorch switching_normalization module (two InstanceNorm2d param sets)."""

    def __init__(self, num_channels):
        c = num_channels
        idx = jnp.arange(c, dtype=jnp.float32)
        # Deterministic, distinct parameter sets so mode 0 / mode 1 differ.
        self.gamma0 = 1.0 + 0.10 * idx
        self.beta0 = 0.05 * idx
        self.gamma1 = 1.0 - 0.05 * idx
        self.beta1 = -0.10 * idx
        self.mode = 0

    def set_mode(self, mode):
        assert mode in [0, 1]
        self.mode = mode

    def __call__(self, x):
        if self.mode == 0:
            return instance_norm_2d(x, self.gamma0, self.beta0)
        else:
            return instance_norm_2d(x, self.gamma1, self.beta1)


def _reference(x, gamma, beta):
    xf = x.astype(jnp.float32)
    mean = jnp.mean(xf, axis=(2, 3), keepdims=True)
    var = jnp.mean((xf - mean) ** 2, axis=(2, 3), keepdims=True)
    y = (xf - mean) * lax.rsqrt(var + EPS)
    return (y * gamma[None, :, None, None] + beta[None, :, None, None]).astype(x.dtype)


if __name__ == "__main__":
    key = jax.random.PRNGKey(0)
    N, C, H, W = 2, 4, 16, 16
    x = jax.random.normal(key, (N, C, H, W), dtype=jnp.float32)

    norm = SwitchingNormalization(C)

    norm.set_mode(0)
    y0 = jax.block_until_ready(norm(x))
    ref0 = _reference(x, norm.gamma0, norm.beta0)

    norm.set_mode(1)
    y1 = jax.block_until_ready(norm(x))
    ref1 = _reference(x, norm.gamma1, norm.beta1)

    ok0 = bool(jnp.allclose(y0, ref0, atol=1e-4, rtol=1e-4))
    ok1 = bool(jnp.allclose(y1, ref1, atol=1e-4, rtol=1e-4))
    assert ok0 and ok1, "mismatch vs reference"
    print("KERNEL_OK")
</pallas_src>

<mosaic_0001>
module attributes {stable_mosaic.version = 11 : i64} {
  func.func @_row_instance_norm_kernel(%arg0: i32, %arg1: memref<8x256xf32, #tpu.memory_space<vmem>>, %arg2: memref<8x2xf32, #tpu.memory_space<vmem>>, %arg3: memref<8x256xf32, #tpu.memory_space<vmem>>) attributes {dimension_semantics = [#tpu.dimension_semantics<parallel>], iteration_bounds = array<i64: 1>, scalar_prefetch = 0 : i64, scratch_operands = 0 : i64, tpu.core_type = #tpu.core_type<tc>, window_params = [{transform_indices = @transform_0, window_bounds = array<i64: 8, 256>}, {transform_indices = @transform_1, window_bounds = array<i64: 8, 2>}, {transform_indices = @transform_2, window_bounds = array<i64: 8, 256>}]} {
    %c0 = arith.constant 0 : index
    %c0_0 = arith.constant 0 : index
    %0 = vector.load %arg1[%c0, %c0_0] : memref<8x256xf32, #tpu.memory_space<vmem>>, vector<8x256xf32>
    %c0_1 = arith.constant 0 : index
    %c0_2 = arith.constant 0 : index
    %1 = vector.load %arg2[%c0_1, %c0_2] : memref<8x2xf32, #tpu.memory_space<vmem>>, vector<8x2xf32>
    %2 = vector.extract_strided_slice %1 {offsets = [0, 0], sizes = [8, 1], strides = [1, 1]} : vector<8x2xf32> to vector<8x1xf32>
    %3 = vector.extract_strided_slice %1 {offsets = [0, 1], sizes = [8, 1], strides = [1, 1]} : vector<8x2xf32> to vector<8x1xf32>
    %cst = arith.constant dense<0.000000e+00> : vector<8xf32>
    %4 = vector.multi_reduction <add>, %0, %cst [1] : vector<8x256xf32> to vector<8xf32>
    %5 = vector.shape_cast %4 : vector<8xf32> to vector<8x1xf32>
    %cst_3 = arith.constant 2.560000e+02 : f32
    %6 = vector.broadcast %cst_3 : f32 to vector<8x1xf32>
    %7 = arith.divf %5, %6 : vector<8x1xf32>
    %8 = vector.broadcast %7 : vector<8x1xf32> to vector<8x256xf32>
    %9 = arith.subf %0, %8 : vector<8x256xf32>
    %10 = arith.mulf %9, %9 : vector<8x256xf32>
    %cst_4 = arith.constant dense<0.000000e+00> : vector<8xf32>
    %11 = vector.multi_reduction <add>, %10, %cst_4 [1] : vector<8x256xf32> to vector<8xf32>
    %12 = vector.shape_cast %11 : vector<8xf32> to vector<8x1xf32>
    %cst_5 = arith.constant 2.560000e+02 : f32
    %13 = vector.broadcast %cst_5 : f32 to vector<8x1xf32>
    %14 = arith.divf %12, %13 : vector<8x1xf32>
    %cst_6 = arith.constant 9.99999974E-6 : f32
    %15 = vector.broadcast %cst_6 : f32 to vector<8x1xf32>
    %16 = arith.addf %14, %15 : vector<8x1xf32>
    %17 = math.rsqrt %16 : vector<8x1xf32>
    %18 = arith.mulf %17, %2 : vector<8x1xf32>
    %19 = vector.broadcast %18 : vector<8x1xf32> to vector<8x256xf32>
    %20 = arith.mulf %9, %19 : vector<8x256xf32>
    %21 = vector.broadcast %3 : vector<8x1xf32> to vector<8x256xf32>
    %22 = arith.addf %20, %21 : vector<8x256xf32>
    %c0_7 = arith.constant 0 : index
    %c0_8 = arith.constant 0 : index
    %23 = vector.load %arg3[%c0_7, %c0_8] : memref<8x256xf32, #tpu.memory_space<vmem>>, vector<8x256xf32>
    tpu.vector_store %arg3[%c0_7, %c0_8], %22 {strides = array<i32>} : memref<8x256xf32, #tpu.memory_space<vmem>>, vector<8x256xf32>,
    return
  }
  func.func @transform_0(%arg0: i32) -> (i32, i32) {
    %c0_i32 = arith.constant 0 : i32
    %c0_i32_0 = arith.constant 0 : i32
    return %arg0, %c0_i32 : i32, i32
  }
  func.func @transform_1(%arg0: i32) -> (i32, i32) {
    %c0_i32 = arith.constant 0 : i32
    %c0_i32_0 = arith.constant 0 : i32
    return %arg0, %c0_i32 : i32, i32
  }
  func.func @transform_2(%arg0: i32) -> (i32, i32) {
    %c0_i32 = arith.constant 0 : i32
    %c0_i32_0 = arith.constant 0 : i32
    return %arg0, %c0_i32 : i32, i32
  }
}

</mosaic_0001>

<llo_original>
// kernel: tpu_custom_call.1
$region0: #{tpu_custom_call.1}
  #allocation0 [shape = 'u32[]', space=smem, size = 0x4, offset = 0x4, fixed_abs, tag = 'smem constant byte address 0x4 - core index']
  #allocation1 [shape = 'u32[72,128]{1,0:T(1,128)}', space=vmem, size = 0x9000, scoped, tag = 'internal scratch']
  %s0 = inlined_call_operand.hbm [shape: f32[8,256], index: 0, kind: input, shape index: {}]
  %s1 = inlined_call_operand.vmem [shape: f32[8,2], index: 1, kind: input, shape index: {}]
  %s2 = inlined_call_operand.hbm [shape: f32[8,256], index: 2, kind: output, shape index: {}]
  %s3 = sld [smem:[#allocation0]]
  $region22: #{tpu_custom_call.1} parent=0
    _
  %s5 = ssub.s32 1, %s3
  %s6 = scalar_select 0, %s5, %s3
  $region1: #{tpu_custom_call.1} parent=0
    #allocation2 [shape = 'u8[8192]{0}', space=vmem, size = 0x2000, scoped, tag = 'input window, operand 0, single buffered']
    #allocation3 [shape = 's32[1]{0}', space=sflag, size = 0x4, scoped, tag = 'scoped memory for tpu_custom_call.1']
    #allocation4 [shape = 's32[1]{0}', space=sflag, size = 0x4, scoped, tag = 'scoped memory for tpu_custom_call.1']
    #allocation5 [shape = 'u8[8192]{0}', space=vmem, size = 0x2000, scoped, tag = 'output window, operand 0, single buffered']
    %7 = vsyncpa [#allocation3], 0
    %8 = vsyncpa [#allocation4], 0
    // Predicated region
    $region2: #{tpu_custom_call.1} parent=1 // pred_check
      _
    $region3: #{tpu_custom_call.1} parent=1 // pred_check_branch
      %10 = sbr.rel (0) target = $region5
    $region4: #{tpu_custom_call.1} parent=1 // pred_region
      %12 = vsyncadd [#allocation3], 0
      %s14 = sshll.u32 %s0, 4
      %s15 = int_to_ptr.hbm [resolvable:$true] %s14
      %s16 = sshll.u32 [#allocation2], 4
      %s17 = int_to_ptr.vmem [resolvable:$true] %s16
      %19 = dma.hbm_to_vmem [thread:$0]  %s15, 256, %s17, [#allocation3]
    $region5: #{tpu_custom_call.1} parent=1 // pred_fallthru
      _
    // Predicated region
    $region6: #{tpu_custom_call.1} parent=1 // pred_check
      _
    $region7: #{tpu_custom_call.1} parent=1 // pred_check_branch
      %21 = sbr.rel (0) target = $region9
    $region8: #{tpu_custom_call.1} parent=1 // pred_region
      _
    $region9: #{tpu_custom_call.1} parent=1 // pred_fallthru
      _
    // Predicated region
    $region10: #{tpu_custom_call.1} parent=1 // pred_check
      _
    $region11: #{tpu_custom_call.1} parent=1 // pred_check_branch
      %23 = sbr.rel (0) target = $region13
    $region12: #{tpu_custom_call.1} parent=1 // pred_region
      %25 = dma.done [#allocation3], 256
    $region13: #{tpu_custom_call.1} parent=1 // pred_fallthru
      _
    %v26 = vld [vmem:[#allocation2] sm:$0xff]
    %v27 = vld [vmem:[#allocation2 + $0x8] sm:$0xff]
    %v28 = vld [vmem:[%s1] sm:$0xff]
    %v29 = vadd.f32 %v26, %v27
    %30 = vadd.xlane.f32.xlu0 %v29
    %v31 = vpop.xlane.xlu0 %30
    %v32 = vrcp.pop 256.0
    %v33 = vmul.f32 256.0, %v32
    %v34 = vsub.f32 1.0, %v33
    %v35 = vmul.f32 %v32, %v34
    %v36 = vadd.f32 %v32, %v35
    %vm37 = vweird.f32 %v32
    %v38 = vsel %vm37, %v32, %v36
    %v39 = vmul.f32 %v31, %v38
    %v40 = vsub.f32 %v26, %v39
    %v41 = vsub.f32 %v27, %v39
    %v42 = vmul.f32 %v40, %v40
    %v43 = vmul.f32 %v41, %v41
    %v44 = vadd.f32 %v42, %v43
    %45 = vadd.xlane.f32.xlu0 %v44
    %v46 = vpop.xlane.xlu0 %45
    %v47 = vmul.f32 %v46, %v38
    %v48 = vadd.f32 %v47, 1e-05
    %v49 = vrsqrt.pop %v48
    %v50 = vmul.f32 %v49, %v48
    %v51 = vmul.f32 %v50, %v49
    %v52 = vmul.f32 0.5, %v51
    %v53 = vsub.f32 1.5, %v52
    %v54 = vmul.f32 %v49, %v53
    %vm55 = vweird.f32 %v48
    %vm56 = vweird.f32 %v49
    %vm57 = vmor %vm55, %vm56
    %v58 = vsel %vm57, %v49, %v54
    %v59 = vmul.f32 %v58, %v28
    %61 = vset.pattern.permute.xlu0 0
    %62 = vperm.xlu0 %61, %v59
    %v63 = vpop.permute.xlu0 %62
    %v65 = vmul.f32 %v40, %v63
    %v66 = vmul.f32 %v41, %v63
    %68 = vset.pattern.permute.xlu0 1
    %69 = vperm.xlu0 %68, %v28
    %v70 = vpop.permute.xlu0 %69
    %v72 = vadd.f32 %v65, %v70
    %v73 = vadd.f32 %v66, %v70
    %74 = vst [vmem:[#allocation5] sm:$0xff] %v72
    %75 = vst [vmem:[#allocation5 + $0x8] sm:$0xff] %v73
    // Predicated region
    $region14: #{tpu_custom_call.1} parent=1 // pred_check
      _
    $region15: #{tpu_custom_call.1} parent=1 // pred_check_branch
      %77 = sbr.rel (0) target = $region17
    $region16: #{tpu_custom_call.1} parent=1 // pred_region
      %79 = vsyncadd [#allocation4], 0
      %s81 = sshll.u32 [#allocation5], 4
      %s82 = int_to_ptr.vmem [resolvable:$true] %s81
      %s83 = sshll.u32 %s2, 4
      %s84 = int_to_ptr.hbm [resolvable:$true] %s83
      %86 = dma.vmem_to_hbm [thread:$0]  %s82, 256, %s84, [#allocation4]
    $region17: #{tpu_custom_call.1} parent=1 // pred_fallthru
      _
    // Predicated region
    $region18: #{tpu_custom_call.1} parent=1 // pred_check
      _
    $region19: #{tpu_custom_call.1} parent=1 // pred_check_branch
      %88 = sbr.rel (0) target = $region21
    $region20: #{tpu_custom_call.1} parent=1 // pred_region
      %90 = dma.done [#allocation4], 256
    $region21: #{tpu_custom_call.1} parent=1 // pred_fallthru
      _
    %91 = vsyncpa [#allocation3], 1
    %92 = vsyncpa [#allocation4], 1

</llo_original>
